<compile_context>
chip_gen: v5e
topology: v5e:2x2
jax: 0.10.0
libtpu: 0.0.40
codegen_flags: <defaults>
</compile_context>

<pallas_src>
import math
from functools import partial

import jax
import jax.numpy as jnp
from jax.experimental import pallas as pl
from jax.experimental.pallas import tpu as pltpu


# ------------------------------------------------------------------ tiled GEMM

def _matmul_bias_kernel(x_ref, w_ref, b_ref, o_ref, *, relu):
    # x/w are fed as bf16 -> no per-tile VPU casts; accumulate in f32 on the MXU.
    y = jnp.dot(x_ref[...], w_ref[...], preferred_element_type=jnp.float32)
    y = y + b_ref[...]
    if relu:
        y = jnp.maximum(y, 0.0)
    o_ref[...] = y.astype(o_ref.dtype)


def matmul_bias(x, w, b, *, relu=False, out_dtype=jnp.float32, tm=512):
    # x: (M, K), w: (K, N), b: (1, N) -> (M, N), tiled over M and software pipelined.
    M, K = x.shape
    N = w.shape[1]
    tm = min(tm, M)
    return pl.pallas_call(
        partial(_matmul_bias_kernel, relu=relu),
        out_shape=jax.ShapeDtypeStruct((M, N), out_dtype),
        grid=(pl.cdiv(M, tm),),
        in_specs=[pl.BlockSpec((tm, K), lambda i: (i, 0)),
                  pl.BlockSpec((K, N), lambda i: (0, 0)),
                  pl.BlockSpec((1, N), lambda i: (0, 0))],
        out_specs=pl.BlockSpec((tm, N), lambda i: (i, 0)),
        compiler_params=pltpu.CompilerParams(
            dimension_semantics=("parallel",),
            vmem_limit_bytes=32 * 1024 * 1024),
    )(x, w, b)


# ------------------------------------------------ fused encoder-stack kernel

def _encoder_stack_kernel(x_ref, pe_ref, bias_ref,
                          ln1g_ref, ln1b_ref, wqkv_ref, bqkv_ref, wo_ref, bo_ref,
                          ln2g_ref, ln2b_ref, w1_ref, b1_ref, w2_ref, b2_ref,
                          afg_ref, afb_ref,
                          o_ref, xs_ref, ctx_ref,
                          *, n_heads, eps, xscale, kv_blk):
    l = pl.program_id(1)
    n_layers = pl.num_programs(1)
    bb, T, D = x_ref.shape
    H = n_heads
    dk = D // H
    sm_scale = 1.0 / math.sqrt(dk)

    @pl.when(l == 0)
    def _():
        # PositionalEncoding: x * sqrt(d) + pe (dropout is identity in eval mode).
        pe = pe_ref[...]
        for b in range(bb):
            xs_ref[b * T:(b + 1) * T, :] = x_ref[b].astype(jnp.float32) * xscale + pe

    def layer_norm(z, g, b):
        mu = jnp.mean(z, axis=-1, keepdims=True)
        var = jnp.mean(jnp.square(z - mu), axis=-1, keepdims=True)
        return (z - mu) * jax.lax.rsqrt(var + eps) * g + b

    x = xs_ref[...]                       # (bb*T, D) f32 residual stream (VMEM-resident)
    bias_all = bias_ref[...]              # (bb, 1, T) additive key-padding bias (0 / min)

    # ---- self-attention sub-block (normalize_before=True, concat_after=False) ----
    xn = layer_norm(x, ln1g_ref[0], ln1b_ref[0]).astype(jnp.bfloat16)
    qkv = jnp.dot(xn, wqkv_ref[0], preferred_element_type=jnp.float32) + bqkv_ref[0]
    qkv = qkv.astype(jnp.bfloat16)        # single cast shared by all heads / batches

    for b in range(bb):
        r0 = b * T
        qkv_b = qkv[r0:r0 + T]            # (T, 3D)
        bias_b = bias_all[b]              # (1, T)
        for h in range(H):
            q_h = qkv_b[:, h * dk:(h + 1) * dk]
            k_h = qkv_b[:, D + h * dk:D + (h + 1) * dk]
            v_h = qkv_b[:, 2 * D + h * dk:2 * D + (h + 1) * dk]

            # flash-style online softmax over KV blocks: live score tile is (T, kv_blk)
            m_i = jnp.full((T, 1), -jnp.inf, jnp.float32)
            l_i = jnp.zeros((T, 1), jnp.float32)
            acc = jnp.zeros((T, dk), jnp.float32)
            for s0 in range(0, T, kv_blk):
                sz = min(kv_blk, T - s0)
                s = jax.lax.dot_general(
                    q_h, k_h[s0:s0 + sz], (((1,), (1,)), ((), ())),
                    preferred_element_type=jnp.float32) * sm_scale
                s = s + bias_b[:, s0:s0 + sz]
                m_new = jnp.maximum(m_i, jnp.max(s, axis=-1, keepdims=True))
                alpha = jnp.exp(m_i - m_new)
                p = jnp.exp(s - m_new)    # masked cols underflow to exactly 0
                l_i = alpha * l_i + jnp.sum(p, axis=-1, keepdims=True)
                acc = alpha * acc + jnp.dot(p.astype(jnp.bfloat16), v_h[s0:s0 + sz],
                                            preferred_element_type=jnp.float32)
                m_i = m_new
            ctx_ref[r0:r0 + T, h * dk:(h + 1) * dk] = (
                acc * pl.reciprocal(l_i, approx=True))

    # output projection stays a single full-width GEMM over all batch rows
    att = jnp.dot(ctx_ref[...].astype(jnp.bfloat16), wo_ref[0],
                  preferred_element_type=jnp.float32) + bo_ref[0]
    x = x + att                           # dropout = identity (eval)

    # ---- position-wise feed-forward sub-block ----
    xn = layer_norm(x, ln2g_ref[0], ln2b_ref[0]).astype(jnp.bfloat16)
    h1 = jnp.maximum(
        jnp.dot(xn, w1_ref[0], preferred_element_type=jnp.float32) + b1_ref[0], 0.0)
    ff = jnp.dot(h1.astype(jnp.bfloat16), w2_ref[0],
                 preferred_element_type=jnp.float32) + b2_ref[0]
    x = x + ff

    xs_ref[...] = x                       # one wide store of the residual stream

    @pl.when(l == n_layers - 1)
    def _():
        # after_norm (normalize_before=True)
        y = layer_norm(x, afg_ref[...], afb_ref[...])
        for b in range(bb):
            o_ref[b] = y[b * T:(b + 1) * T, :].astype(o_ref.dtype)


def encoder_stack(x, pe, mask_bias, sp, after_g, after_b, *,
                  n_heads, eps=1e-12, batch_block=None, kv_block=512):
    B, T, D = x.shape
    L = sp["w1"].shape[0]
    bb = B if batch_block is None else batch_block
    assert B % bb == 0
    nbb = B // bb

    def rep(shape):
        n = len(shape)
        return pl.BlockSpec(shape, lambda i, l, n=n: (0,) * n)

    def per_layer(shape):
        n = len(shape)
        return pl.BlockSpec((1,) + tuple(shape[1:]),
                            lambda i, l, n=n: (l,) + (0,) * (n - 1))

    in_specs = [
        pl.BlockSpec((bb, T, D), lambda i, l: (i, 0, 0)),     # x (consumed at l==0)
        rep((T, D)),                                          # positional encoding
        pl.BlockSpec((bb, 1, T), lambda i, l: (i, 0, 0)),     # additive key-pad bias
        per_layer(sp["ln1g"].shape), per_layer(sp["ln1b"].shape),
        per_layer(sp["wqkv"].shape), per_layer(sp["bqkv"].shape),
        per_layer(sp["wo"].shape), per_layer(sp["bo"].shape),
        per_layer(sp["ln2g"].shape), per_layer(sp["ln2b"].shape),
        per_layer(sp["w1"].shape), per_layer(sp["b1"].shape),
        per_layer(sp["w2"].shape), per_layer(sp["b2"].shape),
        rep((1, D)), rep((1, D)),                             # after_norm g/b
    ]
    return pl.pallas_call(
        partial(_encoder_stack_kernel, n_heads=n_heads, eps=eps,
                xscale=math.sqrt(D), kv_blk=min(kv_block, T)),
        out_shape=jax.ShapeDtypeStruct((B, T, D), jnp.float32),
        grid=(nbb, L),                    # L innermost -> weights DMA'd once per layer
        in_specs=in_specs,
        out_specs=pl.BlockSpec((bb, T, D), lambda i, l: (i, 0, 0)),
        scratch_shapes=[pltpu.VMEM((bb * T, D), jnp.float32),   # residual stream
                        pltpu.VMEM((bb * T, D), jnp.float32)],  # per-head ctx buffer
        compiler_params=pltpu.CompilerParams(
            dimension_semantics=("parallel", "arbitrary"),
            vmem_limit_bytes=48 * 1024 * 1024),
    )(x, pe, mask_bias,
      sp["ln1g"], sp["ln1b"], sp["wqkv"], sp["bqkv"], sp["wo"], sp["bo"],
      sp["ln2g"], sp["ln2b"], sp["w1"], sp["b1"], sp["w2"], sp["b2"],
      after_g, after_b)


# --------------------------------------------------------------- conv glue (NHWC)

def im2col_s2_nhwc(x, K=3, stride=2):
    # x: (B, H, W, C) -> (B, Ho, Wo, K*K*C) with (kh, kw, C) flatten order (bf16).
    B, H, W, C = x.shape
    Ho = (H - K) // stride + 1
    Wo = (W - K) // stride + 1
    cols = []
    for kh in range(K):
        for kw in range(K):
            cols.append(x[:, kh:kh + stride * (Ho - 1) + 1:stride,
                             kw:kw + stride * (Wo - 1) + 1:stride, :])
    return jnp.concatenate(cols, axis=-1), Ho, Wo


def conv2d_s2_relu(x, w, b):
    # x: (B, H, W, Cin) NHWC bf16; w: (Cout, Cin, 3, 3) PyTorch layout bf16; b: (Cout,)
    B = x.shape[0]
    Cout = w.shape[0]
    patches, Ho, Wo = im2col_s2_nhwc(x)
    wf = jnp.transpose(w, (2, 3, 1, 0)).reshape(-1, Cout)     # (kh,kw,Cin) row order
    y = matmul_bias(patches.reshape(B * Ho * Wo, -1), wf, b.reshape(1, Cout),
                    relu=True, out_dtype=jnp.bfloat16)
    return y.reshape(B, Ho, Wo, Cout)                         # stays channels-last


def sinusoidal_pe(T, d):
    pos = jnp.arange(T, dtype=jnp.float32)[:, None]
    div = jnp.exp(jnp.arange(0, d, 2, dtype=jnp.float32) * (-math.log(10000.0) / d))
    pe = jnp.zeros((T, d), jnp.float32)
    pe = pe.at[:, 0::2].set(jnp.sin(pos * div))
    pe = pe.at[:, 1::2].set(jnp.cos(pos * div))
    return pe


# -------------------------------------------------------------- parameters

def init_params(key, idim, d, heads, units, num_blocks):
    # Layer weights are stacked on a leading L axis (selected by the layer grid index)
    # and stored in the "x @ W" orientation (PyTorch nn.Linear weights must be
    # transposed and q/k/v concatenated along columns when porting a checkpoint).
    del heads
    f2 = ((idim - 1) // 2 - 1) // 2
    L = num_blocks
    ks = jax.random.split(key, 7)
    nrm = lambda k, shape: (0.02 * jax.random.normal(k, shape)).astype(jnp.float32)

    return {
        "conv1_w": nrm(ks[0], (d, 1, 3, 3)).astype(jnp.bfloat16),
        "conv1_b": jnp.zeros((d,), jnp.float32),
        "conv2_w": nrm(ks[1], (d, d, 3, 3)).astype(jnp.bfloat16),
        "conv2_b": jnp.zeros((d,), jnp.float32),
        "embed_w": nrm(ks[2], (d * f2, d)).astype(jnp.bfloat16),
        "embed_b": jnp.zeros((1, d), jnp.float32),
        "after_g": jnp.ones((1, d), jnp.float32),
        "after_b": jnp.zeros((1, d), jnp.float32),
        "stack": {
            "ln1g": jnp.ones((L, 1, d), jnp.float32),
            "ln1b": jnp.zeros((L, 1, d), jnp.float32),
            "wqkv": nrm(ks[3], (L, d, 3 * d)).astype(jnp.bfloat16),  # bf16 MXU weights
            "bqkv": jnp.zeros((L, 1, 3 * d), jnp.float32),
            "wo":   nrm(ks[4], (L, d, d)).astype(jnp.bfloat16),
            "bo":   jnp.zeros((L, 1, d), jnp.float32),
            "ln2g": jnp.ones((L, 1, d), jnp.float32),
            "ln2b": jnp.zeros((L, 1, d), jnp.float32),
            "w1":   nrm(ks[5], (L, d, units)).astype(jnp.bfloat16),
            "b1":   jnp.zeros((L, 1, units), jnp.float32),
            "w2":   nrm(ks[6], (L, units, d)).astype(jnp.bfloat16),
            "b2":   jnp.zeros((L, 1, d), jnp.float32),
        },
    }


# ------------------------------------------------------------ full forward

def encoder_forward(params, xs, masks, *, heads):
    # xs: (B, T, idim) float32, masks: (B, 1, T) bool
    B, T, idim = xs.shape
    d = params["embed_b"].shape[-1]

    # Conv2dSubsampling front-end, channels-last (C on the 128-lane axis), bf16.
    x = xs.astype(jnp.bfloat16)[:, :, :, None]                      # (B, T, idim, 1)
    x = conv2d_s2_relu(x, params["conv1_w"], params["conv1_b"])     # (B, T1, F1, d)
    x = conv2d_s2_relu(x, params["conv2_w"], params["conv2_b"])     # (B, T2, F2, d)
    _, T2, F2, C = x.shape

    # PyTorch flattens (C, F2); our NHWC tensor flattens (F2, C) -> permute the tiny
    # embed weight rows once instead of relayouting the activations.
    w = params["embed_w"].reshape(C, F2, d).transpose(1, 0, 2).reshape(F2 * C, d)
    x = matmul_bias(x.reshape(B * T2, F2 * C), w, params["embed_b"],
                    out_dtype=jnp.bfloat16).reshape(B, T2, d)       # bf16 into the stack

    masks_sub = masks[:, :, :-2:2][:, :, :-2:2]                     # conv subsampling of mask
    # Additive key-padding bias precomputed once (hoists compare/select out of the kernel).
    mask_bias = jnp.where(masks_sub, 0.0,
                          jnp.finfo(jnp.float32).min).astype(jnp.float32)

    pe = sinusoidal_pe(T2, d)
    x = encoder_stack(x, pe, mask_bias, params["stack"],
                      params["after_g"], params["after_b"], n_heads=heads)
    return x, masks_sub


# ---------------------------------------------------------------- __main__

if __name__ == "__main__":
    B, T, idim = 2, 32, 16
    attention_dim, heads, linear_units, num_blocks = 32, 4, 64, 2

    key = jax.random.PRNGKey(0)
    k_x, k_p = jax.random.split(key)
    xs = jax.random.normal(k_x, (B, T, idim), dtype=jnp.float32)
    masks = jnp.ones((B, 1, T), dtype=bool)

    params = init_params(k_p, idim, attention_dim, heads, linear_units, num_blocks)

    out, out_masks = encoder_forward(params, xs, masks, heads=heads)
    out = jax.block_until_ready(out)
    out_masks = jax.block_until_ready(out_masks)

    expected_T = ((T - 1) // 2 - 1) // 2
    assert out.shape == (B, expected_T, attention_dim), out.shape
    assert out_masks.shape == (B, 1, expected_T), out_masks.shape
    assert bool(jnp.all(jnp.isfinite(out)))
    print("KERNEL_OK")
</pallas_src>

<mosaic_0001>
module attributes {stable_mosaic.version = 11 : i64} {
  func.func @_matmul_bias_kernel(%arg0: i32, %arg1: memref<210x9xbf16, #tpu.memory_space<vmem>>, %arg2: memref<9x32xbf16, #tpu.memory_space<vmem>>, %arg3: memref<1x32xf32, #tpu.memory_space<vmem>>, %arg4: memref<210x32xbf16, #tpu.memory_space<vmem>>) attributes {dimension_semantics = [#tpu.dimension_semantics<parallel>], iteration_bounds = array<i64: 1>, scalar_prefetch = 0 : i64, scratch_operands = 0 : i64, tpu.core_type = #tpu.core_type<tc>, window_params = [{transform_indices = @transform_0, window_bounds = array<i64: 210, 9>}, {pipeline_mode = #tpu.pipeline_mode<synchronous>, transform_indices = @transform_1, window_bounds = array<i64: 9, 32>}, {pipeline_mode = #tpu.pipeline_mode<synchronous>, transform_indices = @transform_2, window_bounds = array<i64: 1, 32>}, {transform_indices = @transform_3, window_bounds = array<i64: 210, 32>}]} {
    %c0 = arith.constant 0 : index
    %c0_0 = arith.constant 0 : index
    %0 = vector.load %arg1[%c0, %c0_0] : memref<210x9xbf16, #tpu.memory_space<vmem>>, vector<210x9xbf16>
    %c0_1 = arith.constant 0 : index
    %c0_2 = arith.constant 0 : index
    %1 = vector.load %arg2[%c0_1, %c0_2] : memref<9x32xbf16, #tpu.memory_space<vmem>>, vector<9x32xbf16>
    %cst = arith.constant dense<0.000000e+00> : vector<210x32xf32>
    %2 = tpu.matmul %0, %1, %cst {dimension_numbers = #tpu.dot_dimension_numbers<[1], [0], [0], [1], [0, 0, 1, 1], [], []>} : vector<210x9xbf16>, vector<9x32xbf16>, vector<210x32xf32> -> vector<210x32xf32>
    %c0_3 = arith.constant 0 : index
    %c0_4 = arith.constant 0 : index
    %3 = vector.load %arg3[%c0_3, %c0_4] : memref<1x32xf32, #tpu.memory_space<vmem>>, vector<1x32xf32>
    %4 = vector.broadcast %3 : vector<1x32xf32> to vector<210x32xf32>
    %5 = arith.addf %2, %4 : vector<210x32xf32>
    %cst_5 = arith.constant 0.000000e+00 : f32
    %6 = vector.broadcast %cst_5 : f32 to vector<210x32xf32>
    %7 = arith.maximumf %5, %6 : vector<210x32xf32>
    %8 = arith.truncf %7 : vector<210x32xf32> to vector<210x32xbf16>
    %c0_6 = arith.constant 0 : index
    %c0_7 = arith.constant 0 : index
    %9 = vector.load %arg4[%c0_6, %c0_7] : memref<210x32xbf16, #tpu.memory_space<vmem>>, vector<210x32xbf16>
    tpu.vector_store %arg4[%c0_6, %c0_7], %8 {strides = array<i32>} : memref<210x32xbf16, #tpu.memory_space<vmem>>, vector<210x32xbf16>,
    return
  }
  func.func @transform_0(%arg0: i32) -> (i32, i32) {
    %c0_i32 = arith.constant 0 : i32
    %c0_i32_0 = arith.constant 0 : i32
    return %arg0, %c0_i32 : i32, i32
  }
  func.func @transform_1(%arg0: i32) -> (i32, i32) {
    %c0_i32 = arith.constant 0 : i32
    %c0_i32_0 = arith.constant 0 : i32
    %c0_i32_1 = arith.constant 0 : i32
    return %c0_i32, %c0_i32_0 : i32, i32
  }
  func.func @transform_2(%arg0: i32) -> (i32, i32) {
    %c0_i32 = arith.constant 0 : i32
    %c0_i32_0 = arith.constant 0 : i32
    %c0_i32_1 = arith.constant 0 : i32
    return %c0_i32, %c0_i32_0 : i32, i32
  }
  func.func @transform_3(%arg0: i32) -> (i32, i32) {
    %c0_i32 = arith.constant 0 : i32
    %c0_i32_0 = arith.constant 0 : i32
    return %arg0, %c0_i32 : i32, i32
  }
}

</mosaic_0001>

<llo_original>
// kernel: tpu_custom_call.1
$region0: #{tpu_custom_call.1}
  #allocation0 [shape = 'u32[]', space=smem, size = 0x4, offset = 0x4, fixed_abs, tag = 'smem constant byte address 0x4 - core index']
  #allocation1 [shape = 'u32[72,128]{1,0:T(1,128)}', space=vmem, size = 0x9000, scoped, tag = 'internal scratch']
  %s0 = inlined_call_operand.vmem [shape: bf16[210,9], index: 0, kind: input, shape index: {}]
  %s1 = inlined_call_operand.vmem [shape: bf16[9,32], index: 1, kind: input, shape index: {}]
  %s2 = inlined_call_operand.vmem [shape: f32[1,32], index: 2, kind: input, shape index: {}]
  %s3 = inlined_call_operand.vmem [shape: bf16[210,32], index: 3, kind: output, shape index: {}]
  %s4 = sld [smem:[#allocation0]]
  $region22: #{tpu_custom_call.1} parent=0
    _
  %s6 = ssub.s32 1, %s4
  %s7 = scalar_select 0, %s6, %s4
  // Predicated region
  $region2: #{tpu_custom_call.1} parent=0 // pred_check
    _
  $region3: #{tpu_custom_call.1} parent=0 // pred_check_branch
    %9 = sbr.rel (0) target = $region5
  $region4: #{tpu_custom_call.1} parent=0 // pred_region
    _
  $region5: #{tpu_custom_call.1} parent=0 // pred_fallthru
    _
  // Predicated region
  $region6: #{tpu_custom_call.1} parent=0 // pred_check
    _
  $region7: #{tpu_custom_call.1} parent=0 // pred_check_branch
    %11 = sbr.rel (0) target = $region9
  $region8: #{tpu_custom_call.1} parent=0 // pred_region
    _
  $region9: #{tpu_custom_call.1} parent=0 // pred_fallthru
    _
  // Predicated region
  $region10: #{tpu_custom_call.1} parent=0 // pred_check
    _
  $region11: #{tpu_custom_call.1} parent=0 // pred_check_branch
    %13 = sbr.rel (0) target = $region13
  $region12: #{tpu_custom_call.1} parent=0 // pred_region
    _
  $region13: #{tpu_custom_call.1} parent=0 // pred_fallthru
    _
  %v15 = vld [vmem:[%s0] sm:$0xf]
  %v16 = vld [vmem:[%s0 + $0x4] sm:$0xf]
  %v17 = vld [vmem:[%s0 + $0x8] sm:$0xf]
  %v18 = vld [vmem:[%s0 + $0xc] sm:$0xf]
  %v19 = vld [vmem:[%s0 + $0x10] sm:$0xf]
  %v20 = vld [vmem:[%s0 + $0x14] sm:$0xf]
  %v21 = vld [vmem:[%s0 + $0x18] sm:$0xf]
  %v22 = vld [vmem:[%s0 + $0x1c] sm:$0xf]
  %v23 = vld [vmem:[%s0 + $0x20] sm:$0xf]
  %v24 = vld [vmem:[%s0 + $0x24] sm:$0xf]
  %v25 = vld [vmem:[%s0 + $0x28] sm:$0xf]
  %v26 = vld [vmem:[%s0 + $0x2c] sm:$0xf]
  %v27 = vld [vmem:[%s0 + $0x30] sm:$0xf]
  %v28 = vld [vmem:[%s0 + $0x34] sm:$0xf]
  %v29 = vld [vmem:[%s0 + $0x38] sm:$0xf]
  %v30 = vld [vmem:[%s0 + $0x3c] sm:$0xf]
  %v31 = vld [vmem:[%s0 + $0x40] sm:$0xf]
  %v32 = vld [vmem:[%s0 + $0x44] sm:$0xf]
  %v33 = vld [vmem:[%s0 + $0x48] sm:$0xf]
  %v34 = vld [vmem:[%s0 + $0x4c] sm:$0xf]
  %v35 = vld [vmem:[%s0 + $0x50] sm:$0xf]
  %v36 = vld [vmem:[%s0 + $0x54] sm:$0xf]
  %v37 = vld [vmem:[%s0 + $0x58] sm:$0xf]
  %v38 = vld [vmem:[%s0 + $0x5c] sm:$0xf]
  %v39 = vld [vmem:[%s0 + $0x60] sm:$0xf]
  %v40 = vld [vmem:[%s0 + $0x64] sm:$0xf]
  %v41 = vld [vmem:[%s0 + $0x68] sm:$0x1]
  %v42 = vld [vmem:[%s1] sm:$0xf]
  %v43 = vld [vmem:[%s1 + $0x4] sm:$0x1]
  %v44 = vld [vmem:[%s2] sm:$0x1]
  %v46 = vperm.slane %v44, 0
  %v75 = vunpack.c.l.b16 %v15
  %v76 = vunpack.c.l.b16 %v16
  %v77 = vunpack.c.l.b16 %v17
  %v78 = vunpack.c.l.b16 %v18
  %v79 = vunpack.c.l.b16 %v19
  %v80 = vunpack.c.l.b16 %v20
  %v81 = vunpack.c.l.b16 %v21
  %v82 = vunpack.c.l.b16 %v22
  %v83 = vunpack.c.l.b16 %v23
  %v84 = vunpack.c.l.b16 %v24
  %v85 = vunpack.c.l.b16 %v25
  %v86 = vunpack.c.l.b16 %v26
  %v87 = vunpack.c.l.b16 %v27
  %v88 = vunpack.c.l.b16 %v28
  %v89 = vunpack.c.l.b16 %v29
  %v90 = vunpack.c.l.b16 %v30
  %v91 = vunpack.c.l.b16 %v31
  %v92 = vunpack.c.l.b16 %v32
  %v93 = vunpack.c.l.b16 %v33
  %v94 = vunpack.c.l.b16 %v34
  %v95 = vunpack.c.l.b16 %v35
  %v96 = vunpack.c.l.b16 %v36
  %v97 = vunpack.c.l.b16 %v37
  %v98 = vunpack.c.l.b16 %v38
  %v99 = vunpack.c.l.b16 %v39
  %v100 = vunpack.c.l.b16 %v40
  %v101 = vunpack.c.l.b16 %v41
  %v102 = vpack.c.b16 %v76, %v75
  %v103 = vpack.c.b16 %v78, %v77
  %v104 = vpack.c.b16 %v80, %v79
  %v105 = vpack.c.b16 %v82, %v81
  %v106 = vpack.c.b16 %v84, %v83
  %v107 = vpack.c.b16 %v86, %v85
  %v108 = vpack.c.b16 %v88, %v87
  %v109 = vpack.c.b16 %v90, %v89
  %v110 = vpack.c.b16 %v92, %v91
  %v111 = vpack.c.b16 %v94, %v93
  %v112 = vpack.c.b16 %v96, %v95
  %v113 = vpack.c.b16 %v98, %v97
  %v114 = vpack.c.b16 %v100, %v99
  %v115 = vpack.c.b16 %v101, %v101
  %v118 = vunpack.c.l.b16 %v42
  %v119 = vunpack.c.l.b16 %v43
  %v120 = vpack.c.b16 %v119, %v118
  %vm121 = vcmask 72704
  %v123 = vsel %vm121, %v102, 0
  %v126 = vsel %vm121, %v103, 0
  %v129 = vsel %vm121, %v104, 0
  %v132 = vsel %vm121, %v105, 0
  %v135 = vsel %vm121, %v106, 0
  %v138 = vsel %vm121, %v107, 0
  %v141 = vsel %vm121, %v108, 0
  %v144 = vsel %vm121, %v109, 0
  %v147 = vsel %vm121, %v110, 0
  %v150 = vsel %vm121, %v111, 0
  %v153 = vsel %vm121, %v112, 0
  %v156 = vsel %vm121, %v113, 0
  %v159 = vsel %vm121, %v114, 0
  %v162 = vsel %vm121, %v115, 0
  %vm164 = vcmask 1043456
  %vm165 = vcmask 1044480
  %v166 = vsel %vm164, 4294967295, 65535
  %v167 = vsel %vm165, %v166, 0
  %v169 = vand.u32 %v120, %v167
  %171 = vmatpush.bf16.msra.mxu0 0
  %172 = vmatpush.bf16.msra.mxu0 0
  %173 = vmatpush.bf16.msra.mxu0 0
  %174 = vmatpush.bf16.msra.mxu0 0
  %175 = vmatpush.bf16.msra.mxu0 0
  %176 = vmatpush.bf16.msra.mxu0 0
  %177 = vmatpush.bf16.msra.mxu0 0
  %178 = vmatpush.bf16.msra.mxu0 %v169
  %179 = vmatmul.bf16.gmra.mxu0 %v123
  %v180 = vpop.f32.mrf.mxu0
  %v181 = vadd.f32 %v46, %v180
  %v182 = vpop.f32.mrf.mxu0
  %v183 = vadd.f32 %v46, %v182
  %184 = vmatmul.bf16.gmra.mxu0 %v126
  %v185 = vpop.f32.mrf.mxu0
  %v186 = vadd.f32 %v46, %v185
  %v187 = vpop.f32.mrf.mxu0
  %v188 = vadd.f32 %v46, %v187
  %189 = vmatmul.bf16.gmra.mxu0 %v129
  %v190 = vpop.f32.mrf.mxu0
  %v191 = vadd.f32 %v46, %v190
  %v192 = vpop.f32.mrf.mxu0
  %v193 = vadd.f32 %v46, %v192
  %194 = vmatmul.bf16.gmra.mxu0 %v132
  %v195 = vpop.f32.mrf.mxu0
  %v196 = vadd.f32 %v46, %v195
  %v197 = vpop.f32.mrf.mxu0
  %v198 = vadd.f32 %v46, %v197
  %199 = vmatmul.bf16.gmra.mxu0 %v135
  %v200 = vpop.f32.mrf.mxu0
  %v201 = vadd.f32 %v46, %v200
  %v202 = vpop.f32.mrf.mxu0
  %v203 = vadd.f32 %v46, %v202
  %204 = vmatmul.bf16.gmra.mxu0 %v138
  %v205 = vpop.f32.mrf.mxu0
  %v206 = vadd.f32 %v46, %v205
  %v207 = vpop.f32.mrf.mxu0
  %v208 = vadd.f32 %v46, %v207
  %209 = vmatmul.bf16.gmra.mxu0 %v141
  %v210 = vpop.f32.mrf.mxu0
  %v211 = vadd.f32 %v46, %v210
  %v212 = vpop.f32.mrf.mxu0
  %v213 = vadd.f32 %v46, %v212
  %214 = vmatmul.bf16.gmra.mxu0 %v144
  %v215 = vpop.f32.mrf.mxu0
  %v216 = vadd.f32 %v46, %v215
  %v217 = vpop.f32.mrf.mxu0
  %v218 = vadd.f32 %v46, %v217
  %219 = vmatmul.bf16.gmra.mxu0 %v147
  %v220 = vpop.f32.mrf.mxu0
  %v221 = vadd.f32 %v46, %v220
  %v222 = vpop.f32.mrf.mxu0
  %v223 = vadd.f32 %v46, %v222
  %224 = vmatmul.bf16.gmra.mxu0 %v150
  %v225 = vpop.f32.mrf.mxu0
  %v226 = vadd.f32 %v46, %v225
  %v227 = vpop.f32.mrf.mxu0
  %v228 = vadd.f32 %v46, %v227
  %229 = vmatmul.bf16.gmra.mxu0 %v153
  %v230 = vpop.f32.mrf.mxu0
  %v231 = vadd.f32 %v46, %v230
  %v232 = vpop.f32.mrf.mxu0
  %v233 = vadd.f32 %v46, %v232
  %234 = vmatmul.bf16.gmra.mxu0 %v156
  %v235 = vpop.f32.mrf.mxu0
  %v236 = vadd.f32 %v46, %v235
  %v237 = vpop.f32.mrf.mxu0
  %v238 = vadd.f32 %v46, %v237
  %239 = vmatmul.bf16.gmra.mxu0 %v159
  %v240 = vpop.f32.mrf.mxu0
  %v241 = vadd.f32 %v46, %v240
  %v242 = vpop.f32.mrf.mxu0
  %v243 = vadd.f32 %v46, %v242
  %244 = vmatmul.bf16.gmra.mxu0 %v162
  %v245 = vpop.f32.mrf.mxu0
  %v246 = vadd.f32 %v46, %v245
  %v247 = vpop.f32.mrf.mxu0
  %248 = vdwg.mxu0
  %v249 = vmax.f32 %v181, 0.0
  %v250 = vmax.f32 %v183, 0.0
  %v251 = vmax.f32 %v186, 0.0
  %v252 = vmax.f32 %v188, 0.0
  %v253 = vmax.f32 %v191, 0.0
  %v254 = vmax.f32 %v193, 0.0
  %v255 = vmax.f32 %v196, 0.0
  %v256 = vmax.f32 %v198, 0.0
  %v257 = vmax.f32 %v201, 0.0
  %v258 = vmax.f32 %v203, 0.0
  %v259 = vmax.f32 %v206, 0.0
  %v260 = vmax.f32 %v208, 0.0
  %v261 = vmax.f32 %v211, 0.0
  %v262 = vmax.f32 %v213, 0.0
  %v263 = vmax.f32 %v216, 0.0
  %v264 = vmax.f32 %v218, 0.0
  %v265 = vmax.f32 %v221, 0.0
  %v266 = vmax.f32 %v223, 0.0
  %v267 = vmax.f32 %v226, 0.0
  %v268 = vmax.f32 %v228, 0.0
  %v269 = vmax.f32 %v231, 0.0
  %v270 = vmax.f32 %v233, 0.0
  %v271 = vmax.f32 %v236, 0.0
  %v272 = vmax.f32 %v238, 0.0
  %v273 = vmax.f32 %v241, 0.0
  %v274 = vmax.f32 %v243, 0.0
  %v275 = vmax.f32 %v246, 0.0
  %v276 = vpack.c.bf16 %v249, %v249
  %v277 = vpack.c.bf16 %v250, %v250
  %v278 = vpack.c.bf16 %v251, %v251
  %v279 = vpack.c.bf16 %v252, %v252
  %v280 = vpack.c.bf16 %v253, %v253
  %v281 = vpack.c.bf16 %v254, %v254
  %v282 = vpack.c.bf16 %v255, %v255
  %v283 = vpack.c.bf16 %v256, %v256
  %v284 = vpack.c.bf16 %v257, %v257
  %v285 = vpack.c.bf16 %v258, %v258
  %v286 = vpack.c.bf16 %v259, %v259
  %v287 = vpack.c.bf16 %v260, %v260
  %v288 = vpack.c.bf16 %v261, %v261
  %v289 = vpack.c.bf16 %v262, %v262
  %v290 = vpack.c.bf16 %v263, %v263
  %v291 = vpack.c.bf16 %v264, %v264
  %v292 = vpack.c.bf16 %v265, %v265
  %v293 = vpack.c.bf16 %v266, %v266
  %v294 = vpack.c.bf16 %v267, %v267
  %v295 = vpack.c.bf16 %v268, %v268
  %v296 = vpack.c.bf16 %v269, %v269
  %v297 = vpack.c.bf16 %v270, %v270
  %v298 = vpack.c.bf16 %v271, %v271
  %v299 = vpack.c.bf16 %v272, %v272
  %v300 = vpack.c.bf16 %v273, %v273
  %v301 = vpack.c.bf16 %v274, %v274
  %v302 = vpack.c.bf16 %v275, %v275
  %vm303 = vcmask 257024
  %304 = vst.msk [vmem:[%s3] sm:$0xf] %vm303, %v276
  %305 = vst.msk [vmem:[%s3 + $0x4] sm:$0xf] %vm303, %v277
  %306 = vst.msk [vmem:[%s3 + $0x8] sm:$0xf] %vm303, %v278
  %307 = vst.msk [vmem:[%s3 + $0xc] sm:$0xf] %vm303, %v279
  %308 = vst.msk [vmem:[%s3 + $0x10] sm:$0xf] %vm303, %v280
  %309 = vst.msk [vmem:[%s3 + $0x14] sm:$0xf] %vm303, %v281
  %310 = vst.msk [vmem:[%s3 + $0x18] sm:$0xf] %vm303, %v282
  %311 = vst.msk [vmem:[%s3 + $0x1c] sm:$0xf] %vm303, %v283
  %312 = vst.msk [vmem:[%s3 + $0x20] sm:$0xf] %vm303, %v284
  %313 = vst.msk [vmem:[%s3 + $0x24] sm:$0xf] %vm303, %v285
  %314 = vst.msk [vmem:[%s3 + $0x28] sm:$0xf] %vm303, %v286
  %315 = vst.msk [vmem:[%s3 + $0x2c] sm:$0xf] %vm303, %v287
  %316 = vst.msk [vmem:[%s3 + $0x30] sm:$0xf] %vm303, %v288
  %317 = vst.msk [vmem:[%s3 + $0x34] sm:$0xf] %vm303, %v289
  %318 = vst.msk [vmem:[%s3 + $0x38] sm:$0xf] %vm303, %v290
  %319 = vst.msk [vmem:[%s3 + $0x3c] sm:$0xf] %vm303, %v291
  %320 = vst.msk [vmem:[%s3 + $0x40] sm:$0xf] %vm303, %v292
  %321 = vst.msk [vmem:[%s3 + $0x44] sm:$0xf] %vm303, %v293
  %322 = vst.msk [vmem:[%s3 + $0x48] sm:$0xf] %vm303, %v294
  %323 = vst.msk [vmem:[%s3 + $0x4c] sm:$0xf] %vm303, %v295
  %324 = vst.msk [vmem:[%s3 + $0x50] sm:$0xf] %vm303, %v296
  %325 = vst.msk [vmem:[%s3 + $0x54] sm:$0xf] %vm303, %v297
  %326 = vst.msk [vmem:[%s3 + $0x58] sm:$0xf] %vm303, %v298
  %327 = vst.msk [vmem:[%s3 + $0x5c] sm:$0xf] %vm303, %v299
  %328 = vst.msk [vmem:[%s3 + $0x60] sm:$0xf] %vm303, %v300
  %329 = vst.msk [vmem:[%s3 + $0x64] sm:$0xf] %vm303, %v301
  %vm330 = vcmask 253952
  %331 = vst.msk [vmem:[%s3 + $0x68] sm:$0x1] %vm330, %v302
  // Predicated region
  $region14: #{tpu_custom_call.1} parent=0 // pred_check
    _
  $region15: #{tpu_custom_call.1} parent=0 // pred_check_branch
    %333 = sbr.rel (0) target = $region17
  $region16: #{tpu_custom_call.1} parent=0 // pred_region
    _
  $region17: #{tpu_custom_call.1} parent=0 // pred_fallthru
    _
  // Predicated region
  $region18: #{tpu_custom_call.1} parent=0 // pred_check
    _
  $region19: #{tpu_custom_call.1} parent=0 // pred_check_branch
    %335 = sbr.rel (0) target = $region21
  $region20: #{tpu_custom_call.1} parent=0 // pred_region
    _
  $region21: #{tpu_custom_call.1} parent=0 // pred_fallthru
    _

</llo_original>
